<compile_context>
chip_gen: v6e
topology: v6e:2x2x1
jax: 0.10.0
libtpu: 0.0.40
codegen_flags: <defaults>
</compile_context>

<pallas_src>
import jax
import jax.numpy as jnp
from jax.experimental import pallas as pl
from jax.experimental.pallas import tpu as pltpu


def _round_up(v, m):
    return (v + m - 1) // m * m


def _make_quantized_linear_kernel(inv_out_scale, out_zp, out_scale):
    """Builds the fused quantized-Linear kernel with static output qparams baked in.

    qx_ref    : [TB, TK] bf16  zero-point-centered quantized activations (integer grid)
    qw_ref    : [TK, TN] int8  per-channel symmetric quantized weights, pre-transposed
    scale_ref : [1,  TN] fp32  per-output-channel scale = x_scale * w_scale[c]
    b_ref     : [1,  TN] fp32  bias
    o_ref     : [TB, TN] fp32  output tile; doubles as the fp32 accumulator across K
    """

    def kernel(qx_ref, qw_ref, scale_ref, b_ref, o_ref):
        k = pl.program_id(2)

        @pl.when(k == 0)
        def _():
            o_ref[...] = jnp.zeros_like(o_ref)

        # int8 weights widened to bf16 after the DMA (cheap VPU work hidden under MXU);
        # integer-valued bf16 x bf16 matmul with fp32 accumulation on the MXU.
        o_ref[...] += jnp.dot(qx_ref[...], qw_ref[...].astype(jnp.bfloat16),
                              preferred_element_type=jnp.float32)

        # Epilogue once per output tile (last K step): per-channel scale + bias,
        # requantize to quint8 and dequantize, with the zero point folded into the
        # clip bounds (q - zp = clip(round(y / s), -zp, 255 - zp)).
        @pl.when(k == pl.num_programs(2) - 1)
        def _():
            y = o_ref[...] * scale_ref[...] + b_ref[...]
            o_ref[...] = jnp.clip(jnp.round(y * inv_out_scale),
                                  -out_zp, 255.0 - out_zp) * out_scale

    return kernel


class QuantizedLinearTPU:
    """QuantStub -> quantized nn.Linear -> DeQuantStub, with all weight prep done once."""

    def __init__(self, weight, bias, x_scale, x_zp, out_scale, out_zp,
                 *, tile_n=None, tile_k=None, max_tile_b=512):
        OUT, IN = weight.shape
        self.out_features = OUT
        self.in_features = IN
        self.x_scale = float(x_scale)
        self.x_zp = float(x_zp)
        self.out_scale = float(out_scale)
        self.out_zp = float(out_zp)
        self.max_tile_b = max_tile_b

        # --- per-channel symmetric int8 weight quantization (PyTorch eager default) ---
        w_absmax = jnp.max(jnp.abs(weight), axis=1)
        w_scale = jnp.maximum(w_absmax, 1e-12) / 127.0               # [OUT]
        qw = jnp.clip(jnp.round(weight / w_scale[:, None]), -127.0, 127.0)
        qw_t = qw.astype(jnp.int8).T                                 # [IN, OUT], int8 in HBM

        # --- tile selection (lane-dense N tiles; (8,128)-aligned or full-dim blocks) ---
        if tile_n is None:
            tile_n = min(_round_up(OUT, 128), 1024)
        if tile_k is None:
            tile_k = min(_round_up(IN, 128), 1024) if IN >= 128 else _round_up(IN, 8)
        self.tile_n = tile_n
        self.tile_k = tile_k

        IN_pad = _round_up(IN, tile_k)
        OUT_pad = _round_up(OUT, tile_n)
        self.in_pad = IN_pad
        self.out_pad = OUT_pad

        # --- padded, HBM-resident constants (computed exactly once) ---
        self.qw_p = jnp.pad(qw_t, ((0, IN_pad - IN), (0, OUT_pad - OUT)))
        self.scale_row = jnp.pad((self.x_scale * w_scale).astype(jnp.float32),
                                 (0, OUT_pad - OUT)).reshape(1, OUT_pad)
        self.bias_row = jnp.pad(bias.astype(jnp.float32),
                                (0, OUT_pad - OUT)).reshape(1, OUT_pad)
        self.w_scale = w_scale

        self._kernel = _make_quantized_linear_kernel(
            inv_out_scale=1.0 / self.out_scale,
            out_zp=self.out_zp,
            out_scale=self.out_scale,
        )

    def __call__(self, x):
        B, IN = x.shape
        assert IN == self.in_features
        tile_b = min(_round_up(B, 8), self.max_tile_b)
        tile_n, tile_k = self.tile_n, self.tile_k
        B_pad = _round_up(B, tile_b)
        IN_pad, OUT_pad = self.in_pad, self.out_pad

        # --- QuantStub, done once per forward (zero-point-centered integer grid).
        # bf16 is exact for 8-bit integers and halves activation DMA bytes vs fp32.
        qx = jnp.clip(jnp.round(x * (1.0 / self.x_scale)),
                      -self.x_zp, 255.0 - self.x_zp).astype(jnp.bfloat16)
        qx_p = jnp.pad(qx, ((0, B_pad - B), (0, IN_pad - IN)))

        grid = (B_pad // tile_b, OUT_pad // tile_n, IN_pad // tile_k)

        cost = pl.CostEstimate(
            flops=2 * B_pad * IN_pad * OUT_pad,
            transcendentals=0,
            bytes_accessed=(B_pad * IN_pad * 2          # bf16 activations
                            + IN_pad * OUT_pad * 1      # int8 weights
                            + B_pad * OUT_pad * 4       # fp32 output
                            + 2 * OUT_pad * 4),         # scale row + bias row
        )

        out = pl.pallas_call(
            self._kernel,
            out_shape=jax.ShapeDtypeStruct((B_pad, OUT_pad), jnp.float32),
            grid_spec=pltpu.PrefetchScalarGridSpec(
                num_scalar_prefetch=0,
                grid=grid,
                in_specs=[
                    pl.BlockSpec((tile_b, tile_k), lambda i, j, k: (i, k)),
                    pl.BlockSpec((tile_k, tile_n), lambda i, j, k: (k, j)),
                    pl.BlockSpec((1, tile_n), lambda i, j, k: (0, j)),
                    pl.BlockSpec((1, tile_n), lambda i, j, k: (0, j)),
                ],
                out_specs=pl.BlockSpec((tile_b, tile_n), lambda i, j, k: (i, j)),
            ),
            compiler_params=pltpu.CompilerParams(
                dimension_semantics=("parallel", "parallel", "arbitrary"),
                vmem_limit_bytes=48 * 1024 * 1024,
            ),
            cost_estimate=cost,
        )(qx_p, self.qw_p, self.scale_row, self.bias_row)

        return out[:B, :self.out_features]


def reference_forward(x, weight, bias, x_scale, x_zp, out_scale, out_zp):
    """Pure-JAX reference of the same quantized-Linear numerics (per-channel weights)."""
    w_absmax = jnp.max(jnp.abs(weight), axis=1)
    w_scale = jnp.maximum(w_absmax, 1e-12) / 127.0
    qw = jnp.clip(jnp.round(weight / w_scale[:, None]), -127.0, 127.0)       # int8 grid
    qx_c = jnp.clip(jnp.round(x * (1.0 / x_scale)), -x_zp, 255.0 - x_zp)     # quint8, zp-centered
    acc = jnp.dot(qx_c, qw.T, preferred_element_type=jnp.float32)            # exact integer accumulate
    y = acc * (x_scale * w_scale)[None, :] + bias
    return jnp.clip(jnp.round(y * (1.0 / out_scale)), -out_zp, 255.0 - out_zp) * out_scale


if __name__ == "__main__":
    # Small shapes implied by the forward: batch=8, hidden=32 (nn.Linear inner model).
    B, IN, OUT = 8, 32, 32

    key = jax.random.PRNGKey(0)
    kx, kw, kb = jax.random.split(key, 3)
    x = jax.random.normal(kx, (B, IN), dtype=jnp.float32)
    weight = jax.random.normal(kw, (OUT, IN), dtype=jnp.float32) * 0.1
    bias = jax.random.normal(kb, (OUT,), dtype=jnp.float32) * 0.05

    # Deterministic per-tensor activation / output qparams (what torch.quantization's
    # observers would calibrate): input quint8, weight int8 per-channel symmetric,
    # output quint8.
    # TODO(synk): QuantStub/DeQuantStub observer calibration itself (prepare/convert)
    # has no runtime Pallas equivalent; fixed calibrated scales are baked in instead.
    x_scale, x_zp = 4.0 / 255.0, 128.0
    out_scale, out_zp = 4.0 / 255.0, 128.0

    model = QuantizedLinearTPU(weight, bias, x_scale, x_zp, out_scale, out_zp)
    out = jax.block_until_ready(model(x))

    ref = reference_forward(x, weight, bias, x_scale, x_zp, out_scale, out_zp)
    assert out.shape == (B, OUT)
    assert jnp.allclose(out, ref, atol=1e-5), "Pallas output mismatch vs reference"

    print("KERNEL_OK")
</pallas_src>

<mosaic_0001>
module attributes {stable_mosaic.version = 11 : i64} {
  func.func @kernel(%arg0: i32, %arg1: i32, %arg2: i32, %arg3: memref<8x32xbf16, #tpu.memory_space<vmem>>, %arg4: memref<32x128xi8, #tpu.memory_space<vmem>>, %arg5: memref<1x128xf32, #tpu.memory_space<vmem>>, %arg6: memref<1x128xf32, #tpu.memory_space<vmem>>, %arg7: memref<8x128xf32, #tpu.memory_space<vmem>>) attributes {dimension_semantics = [#tpu.dimension_semantics<parallel>, #tpu.dimension_semantics<parallel>, #tpu.dimension_semantics<arbitrary>], iteration_bounds = array<i64: 1, 1, 1>, scalar_prefetch = 0 : i64, scratch_operands = 0 : i64, tpu.core_type = #tpu.core_type<tc>, window_params = [{transform_indices = @transform_0, window_bounds = array<i64: 8, 32>}, {transform_indices = @transform_1, window_bounds = array<i64: 32, 128>}, {transform_indices = @transform_2, window_bounds = array<i64: 1, 128>}, {transform_indices = @transform_3, window_bounds = array<i64: 1, 128>}, {transform_indices = @transform_4, window_bounds = array<i64: 8, 128>}]} {
    %c0_i32 = arith.constant 0 : i32
    %0 = arith.cmpi eq, %arg2, %c0_i32 : i32
    %1 = arith.extui %0 : i1 to i32
    %c0_i32_0 = arith.constant 0 : i32
    %2 = arith.cmpi ne, %1, %c0_i32_0 : i32
    scf.if %2 {
      %cst_10 = arith.constant 0.000000e+00 : f32
      %13 = vector.broadcast %cst_10 : f32 to vector<8x128xf32>
      %c0_11 = arith.constant 0 : index
      %c0_12 = arith.constant 0 : index
      %14 = vector.load %arg7[%c0_11, %c0_12] : memref<8x128xf32, #tpu.memory_space<vmem>>, vector<8x128xf32>
      tpu.vector_store %arg7[%c0_11, %c0_12], %13 {strides = array<i32>} : memref<8x128xf32, #tpu.memory_space<vmem>>, vector<8x128xf32>,
    } else {
    }
    %c0 = arith.constant 0 : index
    %c0_1 = arith.constant 0 : index
    %3 = vector.load %arg7[%c0, %c0_1] : memref<8x128xf32, #tpu.memory_space<vmem>>, vector<8x128xf32>
    %c0_2 = arith.constant 0 : index
    %c0_3 = arith.constant 0 : index
    %4 = vector.load %arg3[%c0_2, %c0_3] : memref<8x32xbf16, #tpu.memory_space<vmem>>, vector<8x32xbf16>
    %c0_4 = arith.constant 0 : index
    %c0_5 = arith.constant 0 : index
    %5 = vector.load %arg4[%c0_4, %c0_5] : memref<32x128xi8, #tpu.memory_space<vmem>>, vector<32x128xi8>
    %6 = arith.sitofp %5 : vector<32x128xi8> to vector<32x128xbf16>
    %cst = arith.constant dense<0.000000e+00> : vector<8x128xf32>
    %7 = tpu.matmul %4, %6, %cst {dimension_numbers = #tpu.dot_dimension_numbers<[1], [0], [0], [1], [0, 0, 1, 1], [], []>} : vector<8x32xbf16>, vector<32x128xbf16>, vector<8x128xf32> -> vector<8x128xf32>
    %8 = arith.addf %3, %7 : vector<8x128xf32>
    %c0_6 = arith.constant 0 : index
    %c0_7 = arith.constant 0 : index
    %9 = vector.load %arg7[%c0_6, %c0_7] : memref<8x128xf32, #tpu.memory_space<vmem>>, vector<8x128xf32>
    tpu.vector_store %arg7[%c0_6, %c0_7], %8 {strides = array<i32>} : memref<8x128xf32, #tpu.memory_space<vmem>>, vector<8x128xf32>,
    %c0_i32_8 = arith.constant 0 : i32
    %10 = arith.cmpi eq, %arg2, %c0_i32_8 : i32
    %11 = arith.extui %10 : i1 to i32
    %c0_i32_9 = arith.constant 0 : i32
    %12 = arith.cmpi ne, %11, %c0_i32_9 : i32
    scf.if %12 {
      %c0_10 = arith.constant 0 : index
      %c0_11 = arith.constant 0 : index
      %13 = vector.load %arg7[%c0_10, %c0_11] : memref<8x128xf32, #tpu.memory_space<vmem>>, vector<8x128xf32>
      %c0_12 = arith.constant 0 : index
      %c0_13 = arith.constant 0 : index
      %14 = vector.load %arg5[%c0_12, %c0_13] : memref<1x128xf32, #tpu.memory_space<vmem>>, vector<1x128xf32>
      %15 = vector.broadcast %14 : vector<1x128xf32> to vector<8x128xf32>
      %16 = arith.mulf %13, %15 : vector<8x128xf32>
      %c0_14 = arith.constant 0 : index
      %c0_15 = arith.constant 0 : index
      %17 = vector.load %arg6[%c0_14, %c0_15] : memref<1x128xf32, #tpu.memory_space<vmem>>, vector<1x128xf32>
      %18 = vector.broadcast %17 : vector<1x128xf32> to vector<8x128xf32>
      %19 = arith.addf %16, %18 : vector<8x128xf32>
      %cst_16 = arith.constant 6.375000e+01 : f32
      %20 = vector.broadcast %cst_16 : f32 to vector<8x128xf32>
      %21 = arith.mulf %19, %20 : vector<8x128xf32>
      %22 = math.roundeven %21 : vector<8x128xf32>
      %cst_17 = arith.constant -1.280000e+02 : f32
      %cst_18 = arith.constant 1.270000e+02 : f32
      %23 = vector.broadcast %cst_17 : f32 to vector<8x128xf32>
      %24 = arith.maximumf %23, %22 : vector<8x128xf32>
      %25 = vector.broadcast %cst_18 : f32 to vector<8x128xf32>
      %26 = arith.minimumf %25, %24 : vector<8x128xf32>
      %cst_19 = arith.constant 0.0156862754 : f32
      %27 = vector.broadcast %cst_19 : f32 to vector<8x128xf32>
      %28 = arith.mulf %26, %27 : vector<8x128xf32>
      %c0_20 = arith.constant 0 : index
      %c0_21 = arith.constant 0 : index
      %29 = vector.load %arg7[%c0_20, %c0_21] : memref<8x128xf32, #tpu.memory_space<vmem>>, vector<8x128xf32>
      tpu.vector_store %arg7[%c0_20, %c0_21], %28 {strides = array<i32>} : memref<8x128xf32, #tpu.memory_space<vmem>>, vector<8x128xf32>,
    } else {
    }
    return
  }
  func.func @transform_0(%arg0: i32, %arg1: i32, %arg2: i32) -> (i32, i32) {
    %c0_i32 = arith.constant 0 : i32
    return %arg0, %arg2 : i32, i32
  }
  func.func @transform_1(%arg0: i32, %arg1: i32, %arg2: i32) -> (i32, i32) {
    %c0_i32 = arith.constant 0 : i32
    return %arg2, %arg1 : i32, i32
  }
  func.func @transform_2(%arg0: i32, %arg1: i32, %arg2: i32) -> (i32, i32) {
    %c0_i32 = arith.constant 0 : i32
    %c0_i32_0 = arith.constant 0 : i32
    return %c0_i32, %arg1 : i32, i32
  }
  func.func @transform_3(%arg0: i32, %arg1: i32, %arg2: i32) -> (i32, i32) {
    %c0_i32 = arith.constant 0 : i32
    %c0_i32_0 = arith.constant 0 : i32
    return %c0_i32, %arg1 : i32, i32
  }
  func.func @transform_4(%arg0: i32, %arg1: i32, %arg2: i32) -> (i32, i32) {
    %c0_i32 = arith.constant 0 : i32
    return %arg0, %arg1 : i32, i32
  }
}

</mosaic_0001>

<llo_original>
// kernel: tpu_custom_call.1
$region0: #{tpu_custom_call.1}
  #allocation0 [shape = 'u32[]', space=smem, size = 0x4, offset = 0x4, fixed_abs, tag = 'smem constant byte address 0x4 - core index']
  #allocation1 [shape = 'u32[144,128]{1,0:T(1,128)}', space=vmem, size = 0x12000, scoped, tag = 'internal scratch']
  %s0 = inlined_call_operand.hbm [shape: bf16[8,32], index: 0, kind: input, shape index: {}]
  %s1 = inlined_call_operand.hbm [shape: s8[32,128], index: 1, kind: input, shape index: {}]
  %s2 = inlined_call_operand.vmem [shape: f32[1,128], index: 2, kind: input, shape index: {}]
  %s3 = inlined_call_operand.vmem [shape: f32[1,128], index: 3, kind: input, shape index: {}]
  %s4 = inlined_call_operand.hbm [shape: f32[8,128], index: 4, kind: output, shape index: {}]
  %s5 = sld [smem:[#allocation0]]
  $region42: #{tpu_custom_call.1} parent=0
    _
  %s7 = ssub.s32 1, %s5
  %s8 = scalar_select 0, %s7, %s5
  $region1: #{tpu_custom_call.1} parent=0
    #allocation2 [shape = 'u8[2048]{0}', space=vmem, size = 0x800, scoped, tag = 'input window, operand 0, single buffered']
    #allocation3 [shape = 's32[1]{0}', space=sflag, size = 0x4, scoped, tag = 'scoped memory for tpu_custom_call.1']
    #allocation4 [shape = 's32[1]{0}', space=sflag, size = 0x4, scoped, tag = 'scoped memory for tpu_custom_call.1']
    #allocation5 [shape = 'u8[4096]{0}', space=vmem, size = 0x1000, scoped, tag = 'input window, operand 1, single buffered']
    #allocation6 [shape = 's32[1]{0}', space=sflag, size = 0x4, scoped, tag = 'scoped memory for tpu_custom_call.1']
    #allocation7 [shape = 'u8[4096]{0}', space=vmem, size = 0x1000, scoped, tag = 'output window, operand 0, single buffered']
    %9 = vsyncpa [#allocation3], 0
    %10 = vsyncpa [#allocation6], 0
    %11 = vsyncpa [#allocation4], 0
    // Predicated region
    $region2: #{tpu_custom_call.1} parent=1 // pred_check
      _
    $region3: #{tpu_custom_call.1} parent=1 // pred_check_branch
      %13 = sbr.rel (0) target = $region5
    $region4: #{tpu_custom_call.1} parent=1 // pred_region
      %s15 = ssub.s32 64, 64
      %16 = vsyncadd [#allocation3], %s15
      %s18 = sshll.u32 [#allocation2], 4
      %s19 = int_to_ptr.vmem [resolvable:$true] %s18
      %21 = dma.hbm_to_vmem [thread:$0]  %s0, 64, %s19, [#allocation3]
    $region5: #{tpu_custom_call.1} parent=1 // pred_fallthru
      _
    // Predicated region
    $region6: #{tpu_custom_call.1} parent=1 // pred_check
      _
    $region7: #{tpu_custom_call.1} parent=1 // pred_check_branch
      %23 = sbr.rel (0) target = $region9
    $region8: #{tpu_custom_call.1} parent=1 // pred_region
      %s25 = ssub.s32 128, 128
      %26 = vsyncadd [#allocation6], %s25
      %s28 = sshll.u32 [#allocation5], 4
      %s29 = int_to_ptr.vmem [resolvable:$true] %s28
      %31 = dma.hbm_to_vmem [thread:$0]  %s1, 128, %s29, [#allocation6]
    $region9: #{tpu_custom_call.1} parent=1 // pred_fallthru
      _
    // Predicated region
    $region10: #{tpu_custom_call.1} parent=1 // pred_check
      _
    $region11: #{tpu_custom_call.1} parent=1 // pred_check_branch
      %33 = sbr.rel (0) target = $region13
    $region12: #{tpu_custom_call.1} parent=1 // pred_region
      _
    $region13: #{tpu_custom_call.1} parent=1 // pred_fallthru
      _
    // Predicated region
    $region14: #{tpu_custom_call.1} parent=1 // pred_check
      _
    $region15: #{tpu_custom_call.1} parent=1 // pred_check_branch
      %35 = sbr.rel (0) target = $region17
    $region16: #{tpu_custom_call.1} parent=1 // pred_region
      _
    $region17: #{tpu_custom_call.1} parent=1 // pred_fallthru
      _
    // Predicated region
    $region18: #{tpu_custom_call.1} parent=1 // pred_check
      _
    $region19: #{tpu_custom_call.1} parent=1 // pred_check_branch
      %37 = sbr.rel (0) target = $region21
    $region20: #{tpu_custom_call.1} parent=1 // pred_region
      %38 = dma.done [#allocation3], 64
    $region21: #{tpu_custom_call.1} parent=1 // pred_fallthru
      _
    // Predicated region
    $region22: #{tpu_custom_call.1} parent=1 // pred_check
      _
    $region23: #{tpu_custom_call.1} parent=1 // pred_check_branch
      %40 = sbr.rel (0) target = $region25
    $region24: #{tpu_custom_call.1} parent=1 // pred_region
      %41 = dma.done [#allocation6], 128
    $region25: #{tpu_custom_call.1} parent=1 // pred_fallthru
      _
    %p43 = scmp.eq.s32.totalorder 0, 0
    // Predicated region
    $region26: #{tpu_custom_call.1} parent=1 // pred_check
      %p44 = pneg %p43
    $region27: #{tpu_custom_call.1} parent=1 // pred_check_branch
      %46 = sbr.rel (%p44) target = $region29
    $region28: #{tpu_custom_call.1} parent=1 // pred_region
      %47 = vst [vmem:[#allocation7] sm:$0xff] 0.0
    $region29: #{tpu_custom_call.1} parent=1 // pred_fallthru
      _
    %v48 = vld [vmem:[#allocation7] sm:$0xff]
    %v49 = vld [vmem:[#allocation2] sm:$0xf]
    %v50 = vld [vmem:[#allocation5] sm:$0xff]
    %v51 = vunpack.c.l.s8.bf16 %v50
    %v52 = vunpack.c.h.s8.bf16 %v50
    %vm53 = vcmask 261120
    %v55 = vsel %vm53, %v49, 0
    %57 = vmatprep.subr.bf16.mxu0 0
    %58 = vmatpush1.bf16.msra.mxu0 0
    %59 = vmatprep.subr.bf16.mxu0 0
    %60 = vmatpush1.bf16.msra.mxu0 0
    %61 = vmatprep.subr.bf16.mxu0 0
    %62 = vmatpush1.bf16.msra.mxu0 0
    %63 = vmatprep.subr.bf16.mxu0 0
    %64 = vmatpush1.bf16.msra.mxu0 0
    %65 = vmatprep.subr.bf16.mxu0 0
    %66 = vmatpush1.bf16.msra.mxu0 0
    %67 = vmatprep.subr.bf16.mxu0 0
    %68 = vmatpush1.bf16.msra.mxu0 0
    %69 = vmatprep.subr.bf16.mxu0 0
    %70 = vmatpush1.bf16.msra.mxu0 %v52
    %71 = vmatprep.subr.bf16.mxu0 0
    %72 = vmatpush1.bf16.msra.mxu0 %v51
    %73 = vmatprep.subr.bf16.mxu0 0
    %74 = vmatpush2.bf16.msra.mxu0 0
    %75 = vmatprep.subr.bf16.mxu0 0
    %76 = vmatpush2.bf16.msra.mxu0 0
    %77 = vmatprep.subr.bf16.mxu0 0
    %78 = vmatpush2.bf16.msra.mxu0 0
    %79 = vmatprep.subr.bf16.mxu0 0
    %80 = vmatpush2.bf16.msra.mxu0 0
    %81 = vmatprep.subr.bf16.mxu0 0
    %82 = vmatpush2.bf16.msra.mxu0 0
    %83 = vmatprep.subr.bf16.mxu0 0
    %84 = vmatpush2.bf16.msra.mxu0 0
    %85 = vmatprep.subr.bf16.mxu0 0
    %86 = vmatpush2.bf16.msra.mxu0 0
    %87 = vmatprep.subr.bf16.mxu0 0
    %88 = vmatpush2.bf16.msra.mxu0 0
    %89 = vmatprep.mubr.bf16.mxu0 0
    %90 = vmatmul.mubr.bf16.gmra.mxu0 %v55
    %v91 = vpop.f32.mrf.mxu0
    %v92 = vadd.f32 0.0, %v91
    %v93 = vpop.f32.mrf.mxu0
    %v94 = vpop.f32.mrf.mxu0
    %v95 = vpop.f32.mrf.mxu0
    %96 = vdwg.mxu0
    %v97 = vadd.f32 %v48, %v92
    %98 = vst [vmem:[#allocation7] sm:$0xff] %v97
    // Predicated region
    $region30: #{tpu_custom_call.1} parent=1 // pred_check
      %p99 = pneg %p43
    $region31: #{tpu_custom_call.1} parent=1 // pred_check_branch
      %101 = sbr.rel (%p99) target = $region33
    $region32: #{tpu_custom_call.1} parent=1 // pred_region
      %v102 = vld [vmem:[#allocation7] sm:$0xff]
      %v103 = vld [vmem:[%s2] sm:$0x1]
      %v105 = vlaneseq
      %v106 = vshrl.u32 %v105, 7
      %v107 = vsub.s32 0, %v106
      %v108 = vrot.slane %v103, %v107
      %v110 = vmul.f32 %v102, %v108
      %v111 = vld [vmem:[%s3] sm:$0x1]
      %v113 = vlaneseq
      %v114 = vshrl.u32 %v113, 7
      %v115 = vsub.s32 0, %v114
      %v116 = vrot.slane %v111, %v115
      %v118 = vadd.f32 %v110, %v116
      %v119 = vmul.f32 %v118, 63.75
      %v120 = vround.ne.pseudo %v119
      %v121 = vmax.f32 %v120, -128.0
      %v122 = vmin.f32 %v121, 127.0
      %v123 = vmul.f32 %v122, 0.015686275
      %124 = vst [vmem:[#allocation7] sm:$0xff] %v123
    $region33: #{tpu_custom_call.1} parent=1 // pred_fallthru
      _
    // Predicated region
    $region34: #{tpu_custom_call.1} parent=1 // pred_check
      _
    $region35: #{tpu_custom_call.1} parent=1 // pred_check_branch
      %126 = sbr.rel (0) target = $region37
    $region36: #{tpu_custom_call.1} parent=1 // pred_region
      %s128 = ssub.s32 128, 128
      %129 = vsyncadd [#allocation4], %s128
      %s131 = sshll.u32 [#allocation7], 4
      %s132 = int_to_ptr.vmem [resolvable:$true] %s131
      %134 = dma.vmem_to_hbm [thread:$0]  %s132, 128, %s4, [#allocation4]
    $region37: #{tpu_custom_call.1} parent=1 // pred_fallthru
      _
    // Predicated region
    $region38: #{tpu_custom_call.1} parent=1 // pred_check
      _
    $region39: #{tpu_custom_call.1} parent=1 // pred_check_branch
      %136 = sbr.rel (0) target = $region41
    $region40: #{tpu_custom_call.1} parent=1 // pred_region
      %137 = dma.done [#allocation4], 128
    $region41: #{tpu_custom_call.1} parent=1 // pred_fallthru
      _
    %138 = vsyncpa [#allocation3], 1
    %139 = vsyncpa [#allocation6], 1
    %140 = vsyncpa [#allocation4], 1

</llo_original>
